<compile_context>
chip_gen: v5e
topology: v5e:2x2
jax: 0.10.0
libtpu: 0.0.40
codegen_flags: <defaults>
</compile_context>

<pallas_src>
import functools

import jax
import jax.numpy as jnp
from jax.experimental import pallas as pl
from jax.experimental.pallas import tpu as pltpu


def _mvsdpa_kernel(q_ref, k_ref, v_ref, out_ref, attn_ref, *, inv_temperature):
    # q_ref:    (TB, 1, d_k)
    # k_ref:    (TB, l, d_k)
    # v_ref:    (TB, l, d_v)
    # out_ref:  (TB, 1, d_v)
    # attn_ref: (TB, 1, l)
    q = q_ref[...] * inv_temperature          # native dtype, temperature folded in once
    k = k_ref[...]                            # native dtype (no f32 upcast of big operands)
    v = v_ref[...]

    # scores[b, 0, l] = sum_d q[b, 0, d] * k[b, l, d]   (batched MXU matmul, f32 accum)
    scores = jnp.einsum("bqd,bld->bql", q, k, preferred_element_type=jnp.float32)

    # Numerically stable softmax over l (last / lane axis), in f32.
    m = jnp.max(scores, axis=-1, keepdims=True)
    e = jnp.exp(scores - m)
    denom = jnp.sum(e, axis=-1, keepdims=True)
    attn = e * pl.reciprocal(denom, approx=True)   # EUP vrcp, frees VALU slots

    attn_ref[...] = attn.astype(attn_ref.dtype)

    # out[b, 0, d] = sum_l attn[b, 0, l] * v[b, l, d]   (batched MXU matmul, f32 accum)
    out = jnp.einsum("bql,bld->bqd", attn.astype(v.dtype), v,
                     preferred_element_type=jnp.float32)
    out_ref[...] = out.astype(out_ref.dtype)


def _default_batch_tile(nb, l, d_k, d_v, itemsize):
    """Pick a batch tile that keeps the double-buffered working set well under a
    conservative VMEM budget (fits v7x's smaller VMEM without raising limits)."""
    budget = 8 * 1024 * 1024
    # k + v blocks plus the sublane-padded (tb, 1, .) q / attn / out blocks,
    # each double-buffered by the Pallas pipeline.
    per_elem = 2 * itemsize * (l * (d_k + d_v) + 8 * (d_k + l + d_v))
    tb = max(1, budget // max(per_elem, 1))
    tb = int(min(tb, 256))                 # bound per-step batched-matmul unroll
    if nb >= 2:
        tb = min(tb, nb // 2)              # >= 2 grid steps: pipelining + both v7x TCs
    tb = max(1, min(tb, nb))
    while nb % tb:                         # make it an exact divisor of nb
        tb -= 1
    return tb


def matrix_vector_sdpa(q, k, v, temperature, *, batch_tile=None):
    """Pallas implementation of MatrixVectorScaledDotProductAttention.forward
    (mask=None, dropout in eval mode). Returns (output, attn)."""
    nb, d_k = q.shape
    nb_k, l, d_k2 = k.shape
    nb_v, l2, d_v = v.shape
    assert nb_k == nb and nb_v == nb and d_k2 == d_k and l2 == l

    if batch_tile is None:
        tb = _default_batch_tile(nb, l, d_k, d_v, q.dtype.itemsize)
    else:
        tb = int(batch_tile)
    assert nb % tb == 0
    grid = (nb // tb,)

    kernel = functools.partial(_mvsdpa_kernel,
                               inv_temperature=1.0 / float(temperature))

    # Free layout changes outside the kernel: give q a size-1 "query" free dim so
    # both in-kernel contractions are plain 3-D batched matmuls.
    q3 = q[:, None, :]                                    # (nb, 1, d_k)

    out_shapes = (
        jax.ShapeDtypeStruct((nb, 1, d_v), q.dtype),
        jax.ShapeDtypeStruct((nb, 1, l), q.dtype),
    )

    grid_spec = pltpu.PrefetchScalarGridSpec(
        num_scalar_prefetch=0,
        grid=grid,
        in_specs=[
            pl.BlockSpec((tb, 1, d_k), lambda i: (i, 0, 0)),
            pl.BlockSpec((tb, l, d_k), lambda i: (i, 0, 0)),
            pl.BlockSpec((tb, l, d_v), lambda i: (i, 0, 0)),
        ],
        out_specs=[
            pl.BlockSpec((tb, 1, d_v), lambda i: (i, 0, 0)),
            pl.BlockSpec((tb, 1, l), lambda i: (i, 0, 0)),
        ],
    )

    out3, attn3 = pl.pallas_call(
        kernel,
        out_shape=out_shapes,
        grid_spec=grid_spec,
        compiler_params=pltpu.CompilerParams(
            dimension_semantics=("parallel",),
            vmem_limit_bytes=32 * 1024 * 1024,
        ),
    )(q3, k, v)

    return out3[:, 0, :], attn3[:, 0, :]


if __name__ == "__main__":
    # Small shapes consistent with the module: (n*b, d_k), (n*b, l, d_k), (n*b, l, d_v)
    NB, L, DK, DV = 16, 8, 32, 32
    temperature = float(DK) ** 0.5

    key = jax.random.PRNGKey(0)
    kq, kk, kv = jax.random.split(key, 3)
    q = jax.random.normal(kq, (NB, DK), dtype=jnp.float32)
    k = jax.random.normal(kk, (NB, L, DK), dtype=jnp.float32)
    v = jax.random.normal(kv, (NB, L, DV), dtype=jnp.float32)

    out, attn = matrix_vector_sdpa(q, k, v, temperature)
    out = jax.block_until_ready(out)
    attn = jax.block_until_ready(attn)

    # Reference check against plain JAX (eval-mode dropout = identity, mask=None).
    scores_ref = jnp.sum(q[:, None, :] * k, axis=2) / temperature
    attn_ref = jax.nn.softmax(scores_ref, axis=1)
    out_ref = jnp.sum(attn_ref[:, :, None] * v, axis=1)

    assert out.shape == (NB, DV) and attn.shape == (NB, L)
    # Loose tolerance: pl.reciprocal(approx=True) trades a few bits of the softmax
    # normalization for the otherwise-idle EUP slot.
    assert jnp.allclose(attn, attn_ref, atol=2e-2, rtol=2e-2)
    assert jnp.allclose(out, out_ref, atol=2e-2, rtol=2e-2)

    print("KERNEL_OK")
</pallas_src>

<mosaic_0001>
module attributes {stable_mosaic.version = 11 : i64} {
  func.func @_mvsdpa_kernel(%arg0: i32, %arg1: memref<8x1x32xf32, #tpu.memory_space<vmem>>, %arg2: memref<8x8x32xf32, #tpu.memory_space<vmem>>, %arg3: memref<8x8x32xf32, #tpu.memory_space<vmem>>, %arg4: memref<8x1x32xf32, #tpu.memory_space<vmem>>, %arg5: memref<8x1x8xf32, #tpu.memory_space<vmem>>) attributes {dimension_semantics = [#tpu.dimension_semantics<parallel>], iteration_bounds = array<i64: 2>, scalar_prefetch = 0 : i64, scratch_operands = 0 : i64, tpu.core_type = #tpu.core_type<tc>, window_params = [{transform_indices = @transform_0, window_bounds = array<i64: 8, 1, 32>}, {transform_indices = @transform_1, window_bounds = array<i64: 8, 8, 32>}, {transform_indices = @transform_2, window_bounds = array<i64: 8, 8, 32>}, {transform_indices = @transform_3, window_bounds = array<i64: 8, 1, 32>}, {transform_indices = @transform_4, window_bounds = array<i64: 8, 1, 8>}]} {
    %c0 = arith.constant 0 : index
    %c0_0 = arith.constant 0 : index
    %c0_1 = arith.constant 0 : index
    %0 = vector.load %arg1[%c0, %c0_0, %c0_1] : memref<8x1x32xf32, #tpu.memory_space<vmem>>, vector<8x1x32xf32>
    %cst = arith.constant 0.176776692 : f32
    %1 = vector.broadcast %cst : f32 to vector<8x1x32xf32>
    %2 = arith.mulf %0, %1 : vector<8x1x32xf32>
    %c0_2 = arith.constant 0 : index
    %c0_3 = arith.constant 0 : index
    %c0_4 = arith.constant 0 : index
    %3 = vector.load %arg2[%c0_2, %c0_3, %c0_4] : memref<8x8x32xf32, #tpu.memory_space<vmem>>, vector<8x8x32xf32>
    %c0_5 = arith.constant 0 : index
    %c0_6 = arith.constant 0 : index
    %c0_7 = arith.constant 0 : index
    %4 = vector.load %arg3[%c0_5, %c0_6, %c0_7] : memref<8x8x32xf32, #tpu.memory_space<vmem>>, vector<8x8x32xf32>
    "tpu.trace_start"() <{level = 10 : i32, message = "bqd,bld->bql"}> : () -> ()
    %cst_8 = arith.constant dense<0.000000e+00> : vector<8x1x8xf32>
    %5 = tpu.matmul %2, %3, %cst_8 {dimension_numbers = #tpu.dot_dimension_numbers<[2], [2], [1], [1], [0, 0, 0, 1, 1, 1], [0], [0]>} : vector<8x1x32xf32>, vector<8x8x32xf32>, vector<8x1x8xf32> -> vector<8x1x8xf32>
    "tpu.trace_stop"() : () -> ()
    %cst_9 = arith.constant dense<0xFF800000> : vector<8x1xf32>
    %6 = vector.multi_reduction <maximumf>, %5, %cst_9 [2] : vector<8x1x8xf32> to vector<8x1xf32>
    %7 = vector.shape_cast %6 : vector<8x1xf32> to vector<8x1x1xf32>
    %8 = vector.broadcast %7 : vector<8x1x1xf32> to vector<8x1x8xf32>
    %9 = arith.subf %5, %8 : vector<8x1x8xf32>
    %10 = math.exp %9 : vector<8x1x8xf32>
    %cst_10 = arith.constant dense<0.000000e+00> : vector<8x1xf32>
    %11 = vector.multi_reduction <add>, %10, %cst_10 [2] : vector<8x1x8xf32> to vector<8x1xf32>
    %12 = vector.shape_cast %11 : vector<8x1xf32> to vector<8x1x1xf32>
    %13 = tpu.reciprocal %12 {approx = true} : vector<8x1x1xf32> -> vector<8x1x1xf32>
    %14 = vector.broadcast %13 : vector<8x1x1xf32> to vector<8x1x8xf32>
    %15 = arith.mulf %10, %14 : vector<8x1x8xf32>
    %c0_11 = arith.constant 0 : index
    %c0_12 = arith.constant 0 : index
    %c0_13 = arith.constant 0 : index
    %16 = vector.load %arg5[%c0_11, %c0_12, %c0_13] : memref<8x1x8xf32, #tpu.memory_space<vmem>>, vector<8x1x8xf32>
    tpu.vector_store %arg5[%c0_11, %c0_12, %c0_13], %15 {strides = array<i32>} : memref<8x1x8xf32, #tpu.memory_space<vmem>>, vector<8x1x8xf32>,
    "tpu.trace_start"() <{level = 10 : i32, message = "bql,bld->bqd"}> : () -> ()
    %cst_14 = arith.constant dense<0.000000e+00> : vector<8x1x32xf32>
    %17 = tpu.matmul %15, %4, %cst_14 {dimension_numbers = #tpu.dot_dimension_numbers<[2], [1], [1], [2], [0, 0, 0, 1, 1, 2], [0], [0]>} : vector<8x1x8xf32>, vector<8x8x32xf32>, vector<8x1x32xf32> -> vector<8x1x32xf32>
    "tpu.trace_stop"() : () -> ()
    %c0_15 = arith.constant 0 : index
    %c0_16 = arith.constant 0 : index
    %c0_17 = arith.constant 0 : index
    %18 = vector.load %arg4[%c0_15, %c0_16, %c0_17] : memref<8x1x32xf32, #tpu.memory_space<vmem>>, vector<8x1x32xf32>
    tpu.vector_store %arg4[%c0_15, %c0_16, %c0_17], %17 {strides = array<i32>} : memref<8x1x32xf32, #tpu.memory_space<vmem>>, vector<8x1x32xf32>,
    return
  }
  func.func @transform_0(%arg0: i32) -> (i32, i32, i32) {
    %c0_i32 = arith.constant 0 : i32
    %c0_i32_0 = arith.constant 0 : i32
    %c0_i32_1 = arith.constant 0 : i32
    return %arg0, %c0_i32, %c0_i32_0 : i32, i32, i32
  }
  func.func @transform_1(%arg0: i32) -> (i32, i32, i32) {
    %c0_i32 = arith.constant 0 : i32
    %c0_i32_0 = arith.constant 0 : i32
    %c0_i32_1 = arith.constant 0 : i32
    return %arg0, %c0_i32, %c0_i32_0 : i32, i32, i32
  }
  func.func @transform_2(%arg0: i32) -> (i32, i32, i32) {
    %c0_i32 = arith.constant 0 : i32
    %c0_i32_0 = arith.constant 0 : i32
    %c0_i32_1 = arith.constant 0 : i32
    return %arg0, %c0_i32, %c0_i32_0 : i32, i32, i32
  }
  func.func @transform_3(%arg0: i32) -> (i32, i32, i32) {
    %c0_i32 = arith.constant 0 : i32
    %c0_i32_0 = arith.constant 0 : i32
    %c0_i32_1 = arith.constant 0 : i32
    return %arg0, %c0_i32, %c0_i32_0 : i32, i32, i32
  }
  func.func @transform_4(%arg0: i32) -> (i32, i32, i32) {
    %c0_i32 = arith.constant 0 : i32
    %c0_i32_0 = arith.constant 0 : i32
    %c0_i32_1 = arith.constant 0 : i32
    return %arg0, %c0_i32, %c0_i32_0 : i32, i32, i32
  }
}

</mosaic_0001>

<llo_original>
// kernel: tpu_custom_call.1
$region0: #{tpu_custom_call.1}
  #allocation0 [shape = 'u32[]', space=smem, size = 0x4, offset = 0x4, fixed_abs, tag = 'smem constant byte address 0x4 - core index']
  #allocation1 [shape = 'u32[72,128]{1,0:T(1,128)}', space=vmem, size = 0x9000, scoped, tag = 'internal scratch']
  %s0 = inlined_call_operand.hbm [shape: f32[16,1,32], index: 0, kind: input, shape index: {}]
  %s1 = inlined_call_operand.hbm [shape: f32[16,8,32], index: 1, kind: input, shape index: {}]
  %s2 = inlined_call_operand.hbm [shape: f32[16,8,32], index: 2, kind: input, shape index: {}]
  %s3 = inlined_call_operand.hbm [shape: f32[16,1,32], index: 3, kind: output, shape index: {0}]
  %s4 = inlined_call_operand.vmem [shape: f32[16,1,8], index: 4, kind: output, shape index: {1}]
  %5 = xla_tuple %s3, %s4
  %s6 = sld [smem:[#allocation0]]
  $region65: #{tpu_custom_call.1} parent=0
    _
  %s8 = ssub.s32 1, %s6
  %s9 = scalar_select 0, %s8, %s6
  $region1: #{tpu_custom_call.1} parent=0
    #allocation2 [shape = 'u8[8192]{0}', space=vmem, size = 0x2000, scoped, tag = 'input window, operand 0']
    #allocation3 [shape = 's32[2]{0}', space=sflag, size = 0x8, scoped, tag = 'scoped memory for tpu_custom_call.1']
    #allocation4 [shape = 's32[2]{0}', space=sflag, size = 0x8, scoped, tag = 'scoped memory for tpu_custom_call.1']
    #allocation5 [shape = 'u8[65536]{0}', space=vmem, size = 0x10000, scoped, tag = 'input window, operand 1']
    #allocation6 [shape = 's32[2]{0}', space=sflag, size = 0x8, scoped, tag = 'scoped memory for tpu_custom_call.1']
    #allocation7 [shape = 'u8[65536]{0}', space=vmem, size = 0x10000, scoped, tag = 'input window, operand 2']
    #allocation8 [shape = 'u8[8192]{0}', space=vmem, size = 0x2000, scoped, tag = 'output window, operand 0']
    %10 = vsyncpa [#allocation3], 0
    %s11 = scalar_lea.sflag [#allocation3], 1
    %12 = vsyncpa %s11, 0
    %13 = vsyncpa [#allocation6], 0
    %s14 = scalar_lea.sflag [#allocation6], 1
    %15 = vsyncpa %s14, 0
    %16 = vsyncpa [#allocation4], 0
    %s17 = scalar_lea.sflag [#allocation4], 1
    %18 = vsyncpa %s17, 0
    loop: start=0, step=1, limit=4
    $region2: #{tpu_custom_call.1} parent=1 // loop_pre_header
      _
    $region3: #{tpu_custom_call.1} parent=1 // loop_header
      %s20 = sphi 0, %s24
      %p21 = scmp.ge.s32.totalorder %s20, 4
      %s30 = sphi 0, %s32
      %s33 = sphi 0, %s30
      %s34 = sphi 0, %s33
      %s50 = sphi 0, %s34
      %s56 = sphi 0, %s58
      %s59 = sphi 0, %s56
      %s60 = sphi 0, %s59
      %s76 = sphi 0, %s60
      %s82 = sphi 0, %s84
      %s85 = sphi 0, %s82
      %s86 = sphi 0, %s85
      %s102 = sphi 0, %s86
      %s108 = sphi 0, %s110
      %s111 = sphi 0, %s108
      %s112 = sphi 0, %s111
      %s128 = sphi 0, %s112
      %s134 = sphi 0, %s136
      %s137 = sphi 0, %s134
      %s138 = sphi 0, %s137
      %s154 = sphi 0, %s138
    $region4: #{tpu_custom_call.1} parent=1 // loop_header_branch
      %23 = sbr.rel (%p21) target = $region8
    $region5: #{tpu_custom_call.1} parent=1 // loop_body
      %s25 = ssub.s32 %s20, 1
      %s26 = ssub.s32 %s20, 2
      %s27 = sadd.s32 %s20, 1
      %s28 = ssub.s32 %s20, %s27
      %p29 = scmp.eq.s32.totalorder %s28, 0
      %s31 = sadd.s32 %s30, 1
      %s32 = scalar_select %p29, %s30, %s31
      %p35 = pneg %p29
      %p36 = scmp.eq.s32.totalorder %s20, 1
      %p37 = por %p35, %p36
      %p38 = scmp.ne.s32.totalorder %s30, %s33
      %p39 = scmp.eq.s32.totalorder %s20, 0
      %p40 = por %p38, %p39
      %p41 = scmp.ne.s32.totalorder %s30, %s33
      %p42 = scmp.eq.s32.totalorder %s25, 1
      %p43 = por %p41, %p42
      %p44 = scmp.ne.s32.totalorder %s33, %s34
      %p45 = scmp.eq.s32.totalorder %s25, 0
      %p46 = por %p44, %p45
      %p47 = scmp.ne.s32.totalorder %s33, %s34
      %p48 = scmp.eq.s32.totalorder %s26, 1
      %p49 = por %p47, %p48
      %p51 = scmp.ne.s32.totalorder %s34, %s50
      %p52 = scmp.eq.s32.totalorder %s26, 0
      %p53 = por %p51, %p52
      %s54 = ssub.s32 %s20, %s27
      %p55 = scmp.eq.s32.totalorder %s54, 0
      %s57 = sadd.s32 %s56, 1
      %s58 = scalar_select %p55, %s56, %s57
      %p61 = pneg %p55
      %p62 = scmp.eq.s32.totalorder %s20, 1
      %p63 = por %p61, %p62
      %p64 = scmp.ne.s32.totalorder %s56, %s59
      %p65 = scmp.eq.s32.totalorder %s20, 0
      %p66 = por %p64, %p65
      %p67 = scmp.ne.s32.totalorder %s56, %s59
      %p68 = scmp.eq.s32.totalorder %s25, 1
      %p69 = por %p67, %p68
      %p70 = scmp.ne.s32.totalorder %s59, %s60
      %p71 = scmp.eq.s32.totalorder %s25, 0
      %p72 = por %p70, %p71
      %p73 = scmp.ne.s32.totalorder %s59, %s60
      %p74 = scmp.eq.s32.totalorder %s26, 1
      %p75 = por %p73, %p74
      %p77 = scmp.ne.s32.totalorder %s60, %s76
      %p78 = scmp.eq.s32.totalorder %s26, 0
      %p79 = por %p77, %p78
      %s80 = ssub.s32 %s20, %s27
      %p81 = scmp.eq.s32.totalorder %s80, 0
      %s83 = sadd.s32 %s82, 1
      %s84 = scalar_select %p81, %s82, %s83
      %p87 = pneg %p81
      %p88 = scmp.eq.s32.totalorder %s20, 1
      %p89 = por %p87, %p88
      %p90 = scmp.ne.s32.totalorder %s82, %s85
      %p91 = scmp.eq.s32.totalorder %s20, 0
      %p92 = por %p90, %p91
      %p93 = scmp.ne.s32.totalorder %s82, %s85
      %p94 = scmp.eq.s32.totalorder %s25, 1
      %p95 = por %p93, %p94
      %p96 = scmp.ne.s32.totalorder %s85, %s86
      %p97 = scmp.eq.s32.totalorder %s25, 0
      %p98 = por %p96, %p97
      %p99 = scmp.ne.s32.totalorder %s85, %s86
      %p100 = scmp.eq.s32.totalorder %s26, 1
      %p101 = por %p99, %p100
      %p103 = scmp.ne.s32.totalorder %s86, %s102
      %p104 = scmp.eq.s32.totalorder %s26, 0
      %p105 = por %p103, %p104
      %s106 = ssub.s32 %s20, %s27
      %p107 = scmp.eq.s32.totalorder %s106, 0
      %s109 = sadd.s32 %s108, 1
      %s110 = scalar_select %p107, %s108, %s109
      %p113 = pneg %p107
      %p114 = scmp.eq.s32.totalorder %s20, 1
      %p115 = por %p113, %p114
      %p116 = scmp.ne.s32.totalorder %s108, %s111
      %p117 = scmp.eq.s32.totalorder %s20, 0
      %p118 = por %p116, %p117
      %p119 = scmp.ne.s32.totalorder %s108, %s111
      %p120 = scmp.eq.s32.totalorder %s25, 1
      %p121 = por %p119, %p120
      %p122 = scmp.ne.s32.totalorder %s111, %s112
      %p123 = scmp.eq.s32.totalorder %s25, 0
      %p124 = por %p122, %p123
      %p125 = scmp.ne.s32.totalorder %s111, %s112
      %p126 = scmp.eq.s32.totalorder %s26, 1
      %p127 = por %p125, %p126
      %p129 = scmp.ne.s32.totalorder %s112, %s128
      %p130 = scmp.eq.s32.totalorder %s26, 0
      %p131 = por %p129, %p130
      %s132 = ssub.s32 %s20, %s27
      %p133 = scmp.eq.s32.totalorder %s132, 0
      %s135 = sadd.s32 %s134, 1
      %s136 = scalar_select %p133, %s134, %s135
      %p139 = pneg %p133
      %p140 = scmp.eq.s32.totalorder %s20, 1
      %p141 = por %p139, %p140
      %p142 = scmp.ne.s32.totalorder %s134, %s137
      %p143 = scmp.eq.s32.totalorder %s20, 0
      %p144 = por %p142, %p143
      %p145 = scmp.ne.s32.totalorder %s134, %s137
      %p146 = scmp.eq.s32.totalorder %s25, 1
      %p147 = por %p145, %p146
      %p148 = scmp.ne.s32.totalorder %s137, %s138
      %p149 = scmp.eq.s32.totalorder %s25, 0
      %p150 = por %p148, %p149
      %p151 = scmp.ne.s32.totalorder %s137, %s138
      %p152 = scmp.eq.s32.totalorder %s26, 1
      %p153 = por %p151, %p152
      %p155 = scmp.ne.s32.totalorder %s138, %s154
      %p156 = scmp.eq.s32.totalorder %s26, 0
      %p157 = por %p155, %p156
      %p158 = scmp.le.s32.totalorder 1, %s20
      %p159 = scmp.lt.s32.totalorder %s20, 3
      %p160 = pnand %p158, %p159
      %p161 = pneg %p160
      // Predicated region
      $region9: #{tpu_custom_call.1} parent=5 // pred_check
        _
      $region10: #{tpu_custom_call.1} parent=5 // pred_check_branch
        %163 = sbr.rel (%p160) target = $region12
      $region11: #{tpu_custom_call.1} parent=5 // pred_region
        %s164 = ssub.s32 %s20, 1
      $region12: #{tpu_custom_call.1} parent=5 // pred_fallthru
        _
      %p165 = scmp.lt.s32.totalorder %s20, 2
      // Predicated region
      $region13: #{tpu_custom_call.1} parent=5 // pred_check
        %p166 = pneg %p165
      $region14: #{tpu_custom_call.1} parent=5 // pred_check_branch
        %168 = sbr.rel (%p166) target = $region16
      $region15: #{tpu_custom_call.1} parent=5 // pred_region
        // Predicated region
        $region17: #{tpu_custom_call.1} parent=15 // pred_check
          %p169 = pneg %p40
        $region18: #{tpu_custom_call.1} parent=15 // pred_check_branch
          %171 = sbr.rel (%p169) target = $region20
        $region19: #{tpu_custom_call.1} parent=15 // pred_region
          %s172 = sand.u32 %s30, 1
          %s173 = scalar_lea.sflag [#allocation3], %s172
          %s174 = sand.u32 %s30, 1
          %s175 = smul.addr %s174, 8
          %s176 = scalar_lea.vmem [#allocation2], %s175
          %s177 = smul.u32 8, %s20
          %179 = vsyncadd %s173, 0
          %s180 = scalar_lea.hbm %s0, %s177
          %s181 = sshll.u32 %s180, 4
          %s182 = int_to_ptr.hbm [resolvable:$true] %s181
          %s183 = sshll.u32 %s176, 4
          %s184 = int_to_ptr.vmem [resolvable:$true] %s183
          %189 = dma.hbm_to_vmem [thread:$0]  %s182, 128, %s184, %s173, 16, 16, 1
        $region20: #{tpu_custom_call.1} parent=15 // pred_fallthru
          _
        // Predicated region
        $region21: #{tpu_custom_call.1} parent=15 // pred_check
          %p190 = pneg %p66
        $region22: #{tpu_custom_call.1} parent=15 // pred_check_branch
          %192 = sbr.rel (%p190) target = $region24
        $region23: #{tpu_custom_call.1} parent=15 // pred_region
          %s193 = sand.u32 %s20, 1
          %s194 = scalar_lea.sflag [#allocation6], %s193
          %s195 = sand.u32 %s56, 1
          %s196 = smul.addr %s195, 64
          %s197 = scalar_lea.vmem [#allocation5], %s196
          %s198 = smul.u32 8, %s20
          %200 = vsyncadd %s194, 0
          %s201 = smul.addr %s198, 8
          %s202 = scalar_lea.hbm %s1, %s201
          %s203 = sshll.u32 %s202, 4
          %s204 = int_to_ptr.hbm [resolvable:$true] %s203
          %s205 = sshll.u32 %s197, 4
          %s206 = int_to_ptr.vmem [resolvable:$true] %s205
          %211 = dma.hbm_to_vmem [thread:$0]  %s204, 1024, %s206, %s194, 128, 128, 8
        $region24: #{tpu_custom_call.1} parent=15 // pred_fallthru
          _
        // Predicated region
        $region25: #{tpu_custom_call.1} parent=15 // pred_check
          %p212 = pneg %p92
        $region26: #{tpu_custom_call.1} parent=15 // pred_check_branch
          %214 = sbr.rel (%p212) target = $region28
        $region27: #{tpu_custom_call.1} parent=15 // pred_region
          %s215 = sand.u32 %s20, 1
          %s216 = scalar_lea.sflag [#allocation6], %s215
          %s217 = sand.u32 %s82, 1
          %s218 = smul.addr %s217, 64
          %s219 = scalar_lea.vmem [#allocation7], %s218
          %s220 = smul.u32 8, %s20
          %222 = vsyncadd %s216, 0
          %s223 = smul.addr %s220, 8
          %s224 = scalar_lea.hbm %s2, %s223
          %s225 = sshll.u32 %s224, 4
          %s226 = int_to_ptr.hbm [resolvable:$true] %s225
          %s227 = sshll.u32 %s219, 4
          %s228 = int_to_ptr.vmem [resolvable:$true] %s227
          %233 = dma.hbm_to_vmem [thread:$0]  %s226, 1024, %s228, %s216, 128, 128, 8
        $region28: #{tpu_custom_call.1} parent=15 // pred_fallthru
          _
      $region16: #{tpu_custom_call.1} parent=5 // pred_fallthru
        _
      %p234 = scmp.le.s32.totalorder 1, %s20
      %p235 = scmp.lt.s32.totalorder %s20, 3
      %p236 = pnand %p234, %p235
      %p237 = pneg %p236
      // Predicated region
      $region29: #{tpu_custom_call.1} parent=5 // pred_check
        _
      $region30: #{tpu_custom_call.1} parent=5 // pred_check_branch
        %239 = sbr.rel (%p236) target = $region32
      $region31: #{tpu_custom_call.1} parent=5 // pred_region
        %s240 = ssub.s32 %s20, 1
        %s241 = sand.u32 %s33, 1
        %s242 = scalar_lea.sflag [#allocation3], %s241
        %s243 = sand.u32 %s33, 1
        %s244 = smul.addr %s243, 8
        %s245 = scalar_lea.vmem [#allocation2], %s244
        // Predicated region
        $region33: #{tpu_custom_call.1} parent=31 // pred_check
          %p246 = pneg %p46
        $region34: #{tpu_custom_call.1} parent=31 // pred_check_branch
          %248 = sbr.rel (%p246) target = $region36
        $region35: #{tpu_custom_call.1} parent=31 // pred_region
          %250 = dma.done %s242, 128
        $region36: #{tpu_custom_call.1} parent=31 // pred_fallthru
          _
        %s251 = sand.u32 %s25, 1
        %s252 = scalar_lea.sflag [#allocation6], %s251
        %s253 = sand.u32 %s59, 1
        %s254 = smul.addr %s253, 64
        %s255 = scalar_lea.vmem [#allocation5], %s254
        // Predicated region
        $region37: #{tpu_custom_call.1} parent=31 // pred_check
          %p256 = pneg %p72
        $region38: #{tpu_custom_call.1} parent=31 // pred_check_branch
          %258 = sbr.rel (%p256) target = $region40
        $region39: #{tpu_custom_call.1} parent=31 // pred_region
          %260 = dma.done %s252, 1024
        $region40: #{tpu_custom_call.1} parent=31 // pred_fallthru
          _
        %s261 = sand.u32 %s25, 1
        %s262 = scalar_lea.sflag [#allocation6], %s261
        %s263 = sand.u32 %s85, 1
        %s264 = smul.addr %s263, 64
        %s265 = scalar_lea.vmem [#allocation7], %s264
        // Predicated region
        $region41: #{tpu_custom_call.1} parent=31 // pred_check
          %p266 = pneg %p98
        $region42: #{tpu_custom_call.1} parent=31 // pred_check_branch
          %268 = sbr.rel (%p266) target = $region44
        $region43: #{tpu_custom_call.1} parent=31 // pred_region
          %270 = dma.done %s262, 1024
        $region44: #{tpu_custom_call.1} parent=31 // pred_fallthru
          _
        %s271 = sand.u32 %s33, 1
        %s272 = scalar_lea.sflag [#allocation3], %s271
        %s273 = sand.u32 %s33, 1
        %s274 = smul.addr %s273, 8
        %s275 = scalar_lea.vmem [#allocation2], %s274
        %p276 = pneg %p46
        %p277 = pneg %p43
        %s278 = sand.u32 %s25, 1
        %s279 = scalar_lea.sflag [#allocation6], %s278
        %s280 = sand.u32 %s59, 1
        %s281 = smul.addr %s280, 64
        %s282 = scalar_lea.vmem [#allocation5], %s281
        %p283 = pneg %p72
        %p284 = pneg %p69
        %s285 = sand.u32 %s25, 1
        %s286 = scalar_lea.sflag [#allocation6], %s285
        %s287 = sand.u32 %s85, 1
        %s288 = smul.addr %s287, 64
        %s289 = scalar_lea.vmem [#allocation7], %s288
        %p290 = pneg %p98
        %p291 = pneg %p95
        %p292 = pneg %p124
        %p293 = pneg %p121
        %s294 = sand.u32 %s111, 1
        %s295 = scalar_lea.sflag [#allocation4], %s294
        %s296 = sand.u32 %s111, 1
        %s297 = smul.addr %s296, 8
        %s298 = scalar_lea.vmem [#allocation8], %s297
        %p299 = pneg %p150
        %p300 = pneg %p147
        %s301 = smul.u32 8, %s25
        %p302 = scmp.lt.s32.totalorder %s301, 15
        %s303 = scalar_select %p302, %s301, 15
        %s304 = scalar_lea.vmem %s4, %s303
        %s305 = smul.u32 8, %s25
        %s306 = smul.u32 8, %s25
        %s307 = smul.u32 8, %s25
        %s308 = smul.u32 8, %s25
        %s309 = smul.u32 8, %s25
        %p310 = scmp.lt.s32.totalorder %s309, 15
        %s311 = scalar_select %p310, %s309, 15
        %s312 = scalar_lea.vmem %s4, %s311
        %s313 = smul.u32 8, %s25
        %v314 = vld [vmem:[%s245] sm:$0x1]
        %v315 = vld [vmem:[%s245 + $0x1] sm:$0x1]
        %v316 = vld [vmem:[%s245 + $0x2] sm:$0x1]
        %v317 = vld [vmem:[%s245 + $0x3] sm:$0x1]
        %v318 = vld [vmem:[%s245 + $0x4] sm:$0x1]
        %v319 = vld [vmem:[%s245 + $0x5] sm:$0x1]
        %v320 = vld [vmem:[%s245 + $0x6] sm:$0x1]
        %v321 = vld [vmem:[%s245 + $0x7] sm:$0x1]
        %v322 = vmul.f32 %v314, 0.17677669
        %v323 = vmul.f32 %v315, 0.17677669
        %v324 = vmul.f32 %v316, 0.17677669
        %v325 = vmul.f32 %v317, 0.17677669
        %v326 = vmul.f32 %v318, 0.17677669
        %v327 = vmul.f32 %v319, 0.17677669
        %v328 = vmul.f32 %v320, 0.17677669
        %v329 = vmul.f32 %v321, 0.17677669
        %v330 = vld [vmem:[%s255] sm:$0xff]
        %v331 = vld [vmem:[%s255 + $0x8] sm:$0xff]
        %v332 = vld [vmem:[%s255 + $0x10] sm:$0xff]
        %v333 = vld [vmem:[%s255 + $0x18] sm:$0xff]
        %v334 = vld [vmem:[%s255 + $0x20] sm:$0xff]
        %v335 = vld [vmem:[%s255 + $0x28] sm:$0xff]
        %v336 = vld [vmem:[%s255 + $0x30] sm:$0xff]
        %v337 = vld [vmem:[%s255 + $0x38] sm:$0xff]
        %v338 = vld [vmem:[%s265] sm:$0xff]
        %v339 = vld [vmem:[%s265 + $0x8] sm:$0xff]
        %v340 = vld [vmem:[%s265 + $0x10] sm:$0xff]
        %v341 = vld [vmem:[%s265 + $0x18] sm:$0xff]
        %v342 = vld [vmem:[%s265 + $0x20] sm:$0xff]
        %v343 = vld [vmem:[%s265 + $0x28] sm:$0xff]
        %v344 = vld [vmem:[%s265 + $0x30] sm:$0xff]
        %v345 = vld [vmem:[%s265 + $0x38] sm:$0xff]
        %vm346 = vcmask 261120
        %v348 = vsel %vm346, %v322, 0
        %v351 = vsel %vm346, %v330, 0
        %353 = vmatpush.xpose.msra.mxu0 0.0
        %354 = vmatpush.xpose.msra.mxu0 0.0
        %355 = vmatpush.xpose.msra.mxu0 0.0
        %356 = vmatpush.xpose.msra.mxu0 0.0
        %357 = vmatpush.xpose.msra.mxu0 0.0
        %358 = vmatpush.xpose.msra.mxu0 0.0
        %359 = vmatpush.xpose.msra.mxu0 0.0
        %360 = vmatpush.xpose.msra.mxu0 0.0
        %361 = vmatpush.xpose.msra.mxu0 0.0
        %362 = vmatpush.xpose.msra.mxu0 0.0
        %363 = vmatpush.xpose.msra.mxu0 0.0
        %364 = vmatpush.xpose.msra.mxu0 0.0
        %365 = vmatpush.xpose.msra.mxu0 0.0
        %366 = vmatpush.xpose.msra.mxu0 0.0
        %367 = vmatpush.xpose.msra.mxu0 0.0
        %368 = vmatpush.xpose.msra.mxu0 %v351
        %369 = vmatmul.f32.gmra.mxu0 %v348
        %v370 = vpop.f32.mrf.mxu0
        %v371 = vadd.f32 0.0, %v370
        %372 = vdwg.mxu0
        %v374 = vsel %vm346, %v323, 0
        %v377 = vsel %vm346, %v331, 0
        %379 = vmatpush.xpose.msra.mxu0 0.0
        %380 = vmatpush.xpose.msra.mxu0 0.0
        %381 = vmatpush.xpose.msra.mxu0 0.0
        %382 = vmatpush.xpose.msra.mxu0 0.0
        %383 = vmatpush.xpose.msra.mxu0 0.0
        %384 = vmatpush.xpose.msra.mxu0 0.0
        %385 = vmatpush.xpose.msra.mxu0 0.0
        %386 = vmatpush.xpose.msra.mxu0 0.0
        %387 = vmatpush.xpose.msra.mxu0 0.0
        %388 = vmatpush.xpose.msra.mxu0 0.0
        %389 = vmatpush.xpose.msra.mxu0 0.0
        %390 = vmatpush.xpose.msra.mxu0 0.0
        %391 = vmatpush.xpose.msra.mxu0 0.0
        %392 = vmatpush.xpose.msra.mxu0 0.0
        %393 = vmatpush.xpose.msra.mxu0 0.0
        %394 = vmatpush.xpose.msra.mxu0 %v377
        %395 = vmatmul.f32.gmra.mxu0 %v374
        %v396 = vpop.f32.mrf.mxu0
        %v397 = vadd.f32 0.0, %v396
        %398 = vdwg.mxu0
        %v400 = vsel %vm346, %v324, 0
        %v403 = vsel %vm346, %v332, 0
        %405 = vmatpush.xpose.msra.mxu0 0.0
        %406 = vmatpush.xpose.msra.mxu0 0.0
        %407 = vmatpush.xpose.msra.mxu0 0.0
        %408 = vmatpush.xpose.msra.mxu0 0.0
        %409 = vmatpush.xpose.msra.mxu0 0.0
        %410 = vmatpush.xpose.msra.mxu0 0.0
        %411 = vmatpush.xpose.msra.mxu0 0.0
        %412 = vmatpush.xpose.msra.mxu0 0.0
        %413 = vmatpush.xpose.msra.mxu0 0.0
        %414 = vmatpush.xpose.msra.mxu0 0.0
        %415 = vmatpush.xpose.msra.mxu0 0.0
        %416 = vmatpush.xpose.msra.mxu0 0.0
        %417 = vmatpush.xpose.msra.mxu0 0.0
        %418 = vmatpush.xpose.msra.mxu0 0.0
        %419 = vmatpush.xpose.msra.mxu0 0.0
        %420 = vmatpush.xpose.msra.mxu0 %v403
        %421 = vmatmul.f32.gmra.mxu0 %v400
        %v422 = vpop.f32.mrf.mxu0
        %v423 = vadd.f32 0.0, %v422
        %424 = vdwg.mxu0
        %v426 = vsel %vm346, %v325, 0
        %v429 = vsel %vm346, %v333, 0
        %431 = vmatpush.xpose.msra.mxu0 0.0
        %432 = vmatpush.xpose.msra.mxu0 0.0
        %433 = vmatpush.xpose.msra.mxu0 0.0
        %434 = vmatpush.xpose.msra.mxu0 0.0
        %435 = vmatpush.xpose.msra.mxu0 0.0
        %436 = vmatpush.xpose.msra.mxu0 0.0
        %437 = vmatpush.xpose.msra.mxu0 0.0
        %438 = vmatpush.xpose.msra.mxu0 0.0
        %439 = vmatpush.xpose.msra.mxu0 0.0
        %440 = vmatpush.xpose.msra.mxu0 0.0
        %441 = vmatpush.xpose.msra.mxu0 0.0
        %442 = vmatpush.xpose.msra.mxu0 0.0
        %443 = vmatpush.xpose.msra.mxu0 0.0
        %444 = vmatpush.xpose.msra.mxu0 0.0
        %445 = vmatpush.xpose.msra.mxu0 0.0
        %446 = vmatpush.xpose.msra.mxu0 %v429
        %447 = vmatmul.f32.gmra.mxu0 %v426
        %v448 = vpop.f32.mrf.mxu0
        %v449 = vadd.f32 0.0, %v448
        %450 = vdwg.mxu0
        %v452 = vsel %vm346, %v326, 0
        %v455 = vsel %vm346, %v334, 0
        %457 = vmatpush.xpose.msra.mxu0 0.0
        %458 = vmatpush.xpose.msra.mxu0 0.0
        %459 = vmatpush.xpose.msra.mxu0 0.0
        %460 = vmatpush.xpose.msra.mxu0 0.0
        %461 = vmatpush.xpose.msra.mxu0 0.0
        %462 = vmatpush.xpose.msra.mxu0 0.0
        %463 = vmatpush.xpose.msra.mxu0 0.0
        %464 = vmatpush.xpose.msra.mxu0 0.0
        %465 = vmatpush.xpose.msra.mxu0 0.0
        %466 = vmatpush.xpose.msra.mxu0 0.0
        %467 = vmatpush.xpose.msra.mxu0 0.0
        %468 = vmatpush.xpose.msra.mxu0 0.0
        %469 = vmatpush.xpose.msra.mxu0 0.0
        %470 = vmatpush.xpose.msra.mxu0 0.0
        %471 = vmatpush.xpose.msra.mxu0 0.0
        %472 = vmatpush.xpose.msra.mxu0 %v455
        %473 = vmatmul.f32.gmra.mxu0 %v452
        %v474 = vpop.f32.mrf.mxu0
        %v475 = vadd.f32 0.0, %v474
        %476 = vdwg.mxu0
        %v478 = vsel %vm346, %v327, 0
        %v481 = vsel %vm346, %v335, 0
        %483 = vmatpush.xpose.msra.mxu0 0.0
        %484 = vmatpush.xpose.msra.mxu0 0.0
        %485 = vmatpush.xpose.msra.mxu0 0.0
        %486 = vmatpush.xpose.msra.mxu0 0.0
        %487 = vmatpush.xpose.msra.mxu0 0.0
        %488 = vmatpush.xpose.msra.mxu0 0.0
        %489 = vmatpush.xpose.msra.mxu0 0.0
        %490 = vmatpush.xpose.msra.mxu0 0.0
        %491 = vmatpush.xpose.msra.mxu0 0.0
        %492 = vmatpush.xpose.msra.mxu0 0.0
        %493 = vmatpush.xpose.msra.mxu0 0.0
        %494 = vmatpush.xpose.msra.mxu0 0.0
        %495 = vmatpush.xpose.msra.mxu0 0.0
        %496 = vmatpush.xpose.msra.mxu0 0.0
        %497 = vmatpush.xpose.msra.mxu0 0.0
        %498 = vmatpush.xpose.msra.mxu0 %v481
        %499 = vmatmul.f32.gmra.mxu0 %v478
        %v500 = vpop.f32.mrf.mxu0
        %v501 = vadd.f32 0.0, %v500
        %502 = vdwg.mxu0
        %v504 = vsel %vm346, %v328, 0
        %v507 = vsel %vm346, %v336, 0
        %509 = vmatpush.xpose.msra.mxu0 0.0
        %510 = vmatpush.xpose.msra.mxu0 0.0
        %511 = vmatpush.xpose.msra.mxu0 0.0
        %512 = vmatpush.xpose.msra.mxu0 0.0
        %513 = vmatpush.xpose.msra.mxu0 0.0
        %514 = vmatpush.xpose.msra.mxu0 0.0
        %515 = vmatpush.xpose.msra.mxu0 0.0
        %516 = vmatpush.xpose.msra.mxu0 0.0
        %517 = vmatpush.xpose.msra.mxu0 0.0
        %518 = vmatpush.xpose.msra.mxu0 0.0
        %519 = vmatpush.xpose.msra.mxu0 0.0
        %520 = vmatpush.xpose.msra.mxu0 0.0
        %521 = vmatpush.xpose.msra.mxu0 0.0
        %522 = vmatpush.xpose.msra.mxu0 0.0
        %523 = vmatpush.xpose.msra.mxu0 0.0
        %524 = vmatpush.xpose.msra.mxu0 %v507
        %525 = vmatmul.f32.gmra.mxu0 %v504
        %v526 = vpop.f32.mrf.mxu0
        %v527 = vadd.f32 0.0, %v526
        %528 = vdwg.mxu0
        %v530 = vsel %vm346, %v329, 0
        %v533 = vsel %vm346, %v337, 0
        %535 = vmatpush.xpose.msra.mxu0 0.0
        %536 = vmatpush.xpose.msra.mxu0 0.0
        %537 = vmatpush.xpose.msra.mxu0 0.0
        %538 = vmatpush.xpose.msra.mxu0 0.0
        %539 = vmatpush.xpose.msra.mxu0 0.0
        %540 = vmatpush.xpose.msra.mxu0 0.0
        %541 = vmatpush.xpose.msra.mxu0 0.0
        %542 = vmatpush.xpose.msra.mxu0 0.0
        %543 = vmatpush.xpose.msra.mxu0 0.0
        %544 = vmatpush.xpose.msra.mxu0 0.0
        %545 = vmatpush.xpose.msra.mxu0 0.0
        %546 = vmatpush.xpose.msra.mxu0 0.0
        %547 = vmatpush.xpose.msra.mxu0 0.0
        %548 = vmatpush.xpose.msra.mxu0 0.0
        %549 = vmatpush.xpose.msra.mxu0 0.0
        %550 = vmatpush.xpose.msra.mxu0 %v533
        %551 = vmatmul.f32.gmra.mxu0 %v530
        %v552 = vpop.f32.mrf.mxu0
        %v553 = vadd.f32 0.0, %v552
        %554 = vdwg.mxu0
        %vm555 = vcmask 57344
        %v556 = vsel %vm555, %v371, -inf
        %557 = vmax.xlane.f32.xlu0 %v556
        %v558 = vpop.xlane.xlu0 %557
        %v559 = vsel %vm555, %v397, -inf
        %560 = vmax.xlane.f32.xlu0 %v559
        %v561 = vpop.xlane.xlu0 %560
        %v562 = vsel %vm555, %v423, -inf
        %563 = vmax.xlane.f32.xlu0 %v562
        %v564 = vpop.xlane.xlu0 %563
        %v565 = vsel %vm555, %v449, -inf
        %566 = vmax.xlane.f32.xlu0 %v565
        %v567 = vpop.xlane.xlu0 %566
        %v568 = vsel %vm555, %v475, -inf
        %569 = vmax.xlane.f32.xlu0 %v568
        %v570 = vpop.xlane.xlu0 %569
        %v571 = vsel %vm555, %v501, -inf
        %572 = vmax.xlane.f32.xlu0 %v571
        %v573 = vpop.xlane.xlu0 %572
        %v574 = vsel %vm555, %v527, -inf
        %575 = vmax.xlane.f32.xlu0 %v574
        %v576 = vpop.xlane.xlu0 %575
        %v577 = vsel %vm555, %v553, -inf
        %578 = vmax.xlane.f32.xlu0 %v577
        %v579 = vpop.xlane.xlu0 %578
        %v580 = vsub.f32 %v371, %v558
        %v581 = vsub.f32 %v397, %v561
        %v582 = vsub.f32 %v423, %v564
        %v583 = vsub.f32 %v449, %v567
        %v584 = vsub.f32 %v475, %v570
        %v585 = vsub.f32 %v501, %v573
        %v586 = vsub.f32 %v527, %v576
        %v587 = vsub.f32 %v553, %v579
        %v588 = vmul.f32 %v580, 1.442695
        %v589 = vpow.pop %v588
        %v590 = vmul.f32 %v581, 1.442695
        %v591 = vpow.pop %v590
        %v592 = vmul.f32 %v582, 1.442695
        %v593 = vpow.pop %v592
        %v594 = vmul.f32 %v583, 1.442695
        %v595 = vpow.pop %v594
        %v596 = vmul.f32 %v584, 1.442695
        %v597 = vpow.pop %v596
        %v598 = vmul.f32 %v585, 1.442695
        %v599 = vpow.pop %v598
        %v600 = vmul.f32 %v586, 1.442695
        %v601 = vpow.pop %v600
        %v602 = vmul.f32 %v587, 1.442695
        %v603 = vpow.pop %v602
        %v604 = vsel %vm555, %v589, 0.0
        %605 = vadd.xlane.f32.xlu0 %v604
        %v606 = vpop.xlane.xlu0 %605
        %v607 = vsel %vm555, %v591, 0.0
        %608 = vadd.xlane.f32.xlu0 %v607
        %v609 = vpop.xlane.xlu0 %608
        %v610 = vsel %vm555, %v593, 0.0
        %611 = vadd.xlane.f32.xlu0 %v610
        %v612 = vpop.xlane.xlu0 %611
        %v613 = vsel %vm555, %v595, 0.0
        %614 = vadd.xlane.f32.xlu0 %v613
        %v615 = vpop.xlane.xlu0 %614
        %v616 = vsel %vm555, %v597, 0.0
        %617 = vadd.xlane.f32.xlu0 %v616
        %v618 = vpop.xlane.xlu0 %617
        %v619 = vsel %vm555, %v599, 0.0
        %620 = vadd.xlane.f32.xlu0 %v619
        %v621 = vpop.xlane.xlu0 %620
        %v622 = vsel %vm555, %v601, 0.0
        %623 = vadd.xlane.f32.xlu0 %v622
        %v624 = vpop.xlane.xlu0 %623
        %v625 = vsel %vm555, %v603, 0.0
        %626 = vadd.xlane.f32.xlu0 %v625
        %v627 = vpop.xlane.xlu0 %626
        %v628 = vrcp.pop %v606
        %v629 = vrcp.pop %v609
        %v630 = vrcp.pop %v612
        %v631 = vrcp.pop %v615
        %v632 = vrcp.pop %v618
        %v633 = vrcp.pop %v621
        %v634 = vrcp.pop %v624
        %v635 = vrcp.pop %v627
        %v636 = vmul.f32 %v589, %v628
        %v637 = vmul.f32 %v591, %v629
        %v638 = vmul.f32 %v593, %v630
        %v639 = vmul.f32 %v595, %v631
        %v640 = vmul.f32 %v597, %v632
        %v641 = vmul.f32 %v599, %v633
        %v642 = vmul.f32 %v601, %v634
        %v643 = vmul.f32 %v603, %v635
        %644 = vst.msk [vmem:[%s312] sm:$0x1] %vm555, %v636
        %645 = vst.msk [vmem:[%s312 + $0x1] sm:$0x1] %vm555, %v637
        %646 = vst.msk [vmem:[%s312 + $0x2] sm:$0x1] %vm555, %v638
        %647 = vst.msk [vmem:[%s312 + $0x3] sm:$0x1] %vm555, %v639
        %648 = vst.msk [vmem:[%s312 + $0x4] sm:$0x1] %vm555, %v640
        %649 = vst.msk [vmem:[%s312 + $0x5] sm:$0x1] %vm555, %v641
        %650 = vst.msk [vmem:[%s312 + $0x6] sm:$0x1] %vm555, %v642
        %651 = vst.msk [vmem:[%s312 + $0x7] sm:$0x1] %vm555, %v643
        %vm652 = vcmask 64512
        %v654 = vsel %vm652, %v636, 0
        %656 = vmatpush.msra.mxu0 0.0
        %657 = vmatpush.msra.mxu0 0.0
        %658 = vmatpush.msra.mxu0 0.0
        %659 = vmatpush.msra.mxu0 0.0
        %660 = vmatpush.msra.mxu0 0.0
        %661 = vmatpush.msra.mxu0 0.0
        %662 = vmatpush.msra.mxu0 0.0
        %663 = vmatpush.msra.mxu0 0.0
        %664 = vmatpush.msra.mxu0 0.0
        %665 = vmatpush.msra.mxu0 0.0
        %666 = vmatpush.msra.mxu0 0.0
        %667 = vmatpush.msra.mxu0 0.0
        %668 = vmatpush.msra.mxu0 0.0
        %669 = vmatpush.msra.mxu0 0.0
        %670 = vmatpush.msra.mxu0 0.0
        %671 = vmatpush.msra.mxu0 %v338
        %672 = vmatmul.f32.gmra.mxu0 %v654
        %v673 = vpop.f32.mrf.mxu0
        %v674 = vadd.f32 0.0, %v673
        %675 = vdwg.mxu0
        %v677 = vsel %vm652, %v637, 0
        %679 = vmatpush.msra.mxu0 0.0
        %680 = vmatpush.msra.mxu0 0.0
        %681 = vmatpush.msra.mxu0 0.0
        %682 = vmatpush.msra.mxu0 0.0
        %683 = vmatpush.msra.mxu0 0.0
        %684 = vmatpush.msra.mxu0 0.0
        %685 = vmatpush.msra.mxu0 0.0
        %686 = vmatpush.msra.mxu0 0.0
        %687 = vmatpush.msra.mxu0 0.0
        %688 = vmatpush.msra.mxu0 0.0
        %689 = vmatpush.msra.mxu0 0.0
        %690 = vmatpush.msra.mxu0 0.0
        %691 = vmatpush.msra.mxu0 0.0
        %692 = vmatpush.msra.mxu0 0.0
        %693 = vmatpush.msra.mxu0 0.0
        %694 = vmatpush.msra.mxu0 %v339
        %695 = vmatmul.f32.gmra.mxu0 %v677
        %v696 = vpop.f32.mrf.mxu0
        %v697 = vadd.f32 0.0, %v696
        %698 = vdwg.mxu0
        %v700 = vsel %vm652, %v638, 0
        %702 = vmatpush.msra.mxu0 0.0
        %703 = vmatpush.msra.mxu0 0.0
        %704 = vmatpush.msra.mxu0 0.0
        %705 = vmatpush.msra.mxu0 0.0
        %706 = vmatpush.msra.mxu0 0.0
        %707 = vmatpush.msra.mxu0 0.0
        %708 = vmatpush.msra.mxu0 0.0
        %709 = vmatpush.msra.mxu0 0.0
        %710 = vmatpush.msra.mxu0 0.0
        %711 = vmatpush.msra.mxu0 0.0
        %712 = vmatpush.msra.mxu0 0.0
        %713 = vmatpush.msra.mxu0 0.0
        %714 = vmatpush.msra.mxu0 0.0
        %715 = vmatpush.msra.mxu0 0.0
        %716 = vmatpush.msra.mxu0 0.0
        %717 = vmatpush.msra.mxu0 %v340
        %718 = vmatmul.f32.gmra.mxu0 %v700
        %v719 = vpop.f32.mrf.mxu0
        %v720 = vadd.f32 0.0, %v719
        %721 = vdwg.mxu0
        %v723 = vsel %vm652, %v639, 0
        %725 = vmatpush.msra.mxu0 0.0
        %726 = vmatpush.msra.mxu0 0.0
        %727 = vmatpush.msra.mxu0 0.0
        %728 = vmatpush.msra.mxu0 0.0
        %729 = vmatpush.msra.mxu0 0.0
        %730 = vmatpush.msra.mxu0 0.0
        %731 = vmatpush.msra.mxu0 0.0
        %732 = vmatpush.msra.mxu0 0.0
        %733 = vmatpush.msra.mxu0 0.0
        %734 = vmatpush.msra.mxu0 0.0
        %735 = vmatpush.msra.mxu0 0.0
        %736 = vmatpush.msra.mxu0 0.0
        %737 = vmatpush.msra.mxu0 0.0
        %738 = vmatpush.msra.mxu0 0.0
        %739 = vmatpush.msra.mxu0 0.0
        %740 = vmatpush.msra.mxu0 %v341
        %741 = vmatmul.f32.gmra.mxu0 %v723
        %v742 = vpop.f32.mrf.mxu0
        %v743 = vadd.f32 0.0, %v742
        %744 = vdwg.mxu0
        %v746 = vsel %vm652, %v640, 0
        %748 = vmatpush.msra.mxu0 0.0
        %749 = vmatpush.msra.mxu0 0.0
        %750 = vmatpush.msra.mxu0 0.0
        %751 = vmatpush.msra.mxu0 0.0
        %752 = vmatpush.msra.mxu0 0.0
        %753 = vmatpush.msra.mxu0 0.0
        %754 = vmatpush.msra.mxu0 0.0
        %755 = vmatpush.msra.mxu0 0.0
        %756 = vmatpush.msra.mxu0 0.0
        %757 = vmatpush.msra.mxu0 0.0
        %758 = vmatpush.msra.mxu0 0.0
        %759 = vmatpush.msra.mxu0 0.0
        %760 = vmatpush.msra.mxu0 0.0
        %761 = vmatpush.msra.mxu0 0.0
        %762 = vmatpush.msra.mxu0 0.0
        %763 = vmatpush.msra.mxu0 %v342
        %764 = vmatmul.f32.gmra.mxu0 %v746
        %v765 = vpop.f32.mrf.mxu0
        %v766 = vadd.f32 0.0, %v765
        %767 = vdwg.mxu0
        %v769 = vsel %vm652, %v641, 0
        %771 = vmatpush.msra.mxu0 0.0
        %772 = vmatpush.msra.mxu0 0.0
        %773 = vmatpush.msra.mxu0 0.0
        %774 = vmatpush.msra.mxu0 0.0
        %775 = vmatpush.msra.mxu0 0.0
        %776 = vmatpush.msra.mxu0 0.0
        %777 = vmatpush.msra.mxu0 0.0
        %778 = vmatpush.msra.mxu0 0.0
        %779 = vmatpush.msra.mxu0 0.0
        %780 = vmatpush.msra.mxu0 0.0
        %781 = vmatpush.msra.mxu0 0.0
        %782 = vmatpush.msra.mxu0 0.0
        %783 = vmatpush.msra.mxu0 0.0
        %784 = vmatpush.msra.mxu0 0.0
        %785 = vmatpush.msra.mxu0 0.0
        %786 = vmatpush.msra.mxu0 %v343
        %787 = vmatmul.f32.gmra.mxu0 %v769
        %v788 = vpop.f32.mrf.mxu0
        %v789 = vadd.f32 0.0, %v788
        %790 = vdwg.mxu0
        %v792 = vsel %vm652, %v642, 0
        %794 = vmatpush.msra.mxu0 0.0
        %795 = vmatpush.msra.mxu0 0.0
        %796 = vmatpush.msra.mxu0 0.0
        %797 = vmatpush.msra.mxu0 0.0
        %798 = vmatpush.msra.mxu0 0.0
        %799 = vmatpush.msra.mxu0 0.0
        %800 = vmatpush.msra.mxu0 0.0
        %801 = vmatpush.msra.mxu0 0.0
        %802 = vmatpush.msra.mxu0 0.0
        %803 = vmatpush.msra.mxu0 0.0
        %804 = vmatpush.msra.mxu0 0.0
        %805 = vmatpush.msra.mxu0 0.0
        %806 = vmatpush.msra.mxu0 0.0
        %807 = vmatpush.msra.mxu0 0.0
        %808 = vmatpush.msra.mxu0 0.0
        %809 = vmatpush.msra.mxu0 %v344
        %810 = vmatmul.f32.gmra.mxu0 %v792
        %v811 = vpop.f32.mrf.mxu0
        %v812 = vadd.f32 0.0, %v811
        %813 = vdwg.mxu0
        %v815 = vsel %vm652, %v643, 0
        %817 = vmatpush.msra.mxu0 0.0
        %818 = vmatpush.msra.mxu0 0.0
        %819 = vmatpush.msra.mxu0 0.0
        %820 = vmatpush.msra.mxu0 0.0
        %821 = vmatpush.msra.mxu0 0.0
        %822 = vmatpush.msra.mxu0 0.0
        %823 = vmatpush.msra.mxu0 0.0
        %824 = vmatpush.msra.mxu0 0.0
        %825 = vmatpush.msra.mxu0 0.0
        %826 = vmatpush.msra.mxu0 0.0
        %827 = vmatpush.msra.mxu0 0.0
        %828 = vmatpush.msra.mxu0 0.0
        %829 = vmatpush.msra.mxu0 0.0
        %830 = vmatpush.msra.mxu0 0.0
        %831 = vmatpush.msra.mxu0 0.0
        %832 = vmatpush.msra.mxu0 %v345
        %833 = vmatmul.f32.gmra.mxu0 %v815
        %v834 = vpop.f32.mrf.mxu0
        %v835 = vadd.f32 0.0, %v834
        %836 = vdwg.mxu0
        %vm837 = vcmask 253952
        %838 = vst.msk [vmem:[%s298] sm:$0x1] %vm837, %v674
        %839 = vst.msk [vmem:[%s298 + $0x1] sm:$0x1] %vm837, %v697
        %840 = vst.msk [vmem:[%s298 + $0x2] sm:$0x1] %vm837, %v720
        %841 = vst.msk [vmem:[%s298 + $0x3] sm:$0x1] %vm837, %v743
        %842 = vst.msk [vmem:[%s298 + $0x4] sm:$0x1] %vm837, %v766
        %843 = vst.msk [vmem:[%s298 + $0x5] sm:$0x1] %vm837, %v789
        %844 = vst.msk [vmem:[%s298 + $0x6] sm:$0x1] %vm837, %v812
        %845 = vst.msk [vmem:[%s298 + $0x7] sm:$0x1] %vm837, %v835
        %s846 = sand.u32 %s111, 1
        %s847 = scalar_lea.sflag [#allocation4], %s846
        %s848 = sand.u32 %s111, 1
        %s849 = smul.addr %s848, 8
        %s850 = scalar_lea.vmem [#allocation8], %s849
        %s851 = smul.u32 8, %s25
        %p852 = scmp.lt.s32.totalorder %s851, 15
        %s853 = scalar_select %p852, %s851, 15
        %s854 = scalar_lea.vmem %s4, %s853
        // Predicated region
        $region45: #{tpu_custom_call.1} parent=31 // pred_check
          %p855 = pneg %p121
        $region46: #{tpu_custom_call.1} parent=31 // pred_check_branch
          %857 = sbr.rel (%p855) target = $region48
        $region47: #{tpu_custom_call.1} parent=31 // pred_region
          %s858 = smul.u32 8, %s25
          %860 = vsyncadd %s847, 0
          %s861 = scalar_lea.hbm %s3, %s858
          %s862 = sshll.u32 %s850, 4
          %s863 = int_to_ptr.vmem [resolvable:$true] %s862
          %s864 = sshll.u32 %s861, 4
          %s865 = int_to_ptr.hbm [resolvable:$true] %s864
          %870 = dma.vmem_to_hbm [thread:$0]  %s863, 128, %s865, %s847, 16, 16, 1
        $region48: #{tpu_custom_call.1} parent=31 // pred_fallthru
          _
        // Predicated region
        $region49: #{tpu_custom_call.1} parent=31 // pred_check
          %p871 = pneg %p147
        $region50: #{tpu_custom_call.1} parent=31 // pred_check_branch
          %873 = sbr.rel (%p871) target = $region52
        $region51: #{tpu_custom_call.1} parent=31 // pred_region
          %s874 = smul.u32 8, %s25
        $region52: #{tpu_custom_call.1} parent=31 // pred_fallthru
          _
      $region32: #{tpu_custom_call.1} parent=5 // pred_fallthru
        _
      %p875 = scmp.le.s32.totalorder 2, %s20
      // Predicated region
      $region53: #{tpu_custom_call.1} parent=5 // pred_check
        %p876 = pneg %p875
      $region54: #{tpu_custom_call.1} parent=5 // pred_check_branch
        %878 = sbr.rel (%p876) target = $region56
      $region55: #{tpu_custom_call.1} parent=5 // pred_region
        %s879 = ssub.s32 %s20, 2
        // Predicated region
        $region57: #{tpu_custom_call.1} parent=55 // pred_check
          %p880 = pneg %p127
        $region58: #{tpu_custom_call.1} parent=55 // pred_check_branch
          %882 = sbr.rel (%p880) target = $region60
        $region59: #{tpu_custom_call.1} parent=55 // pred_region
          %s883 = sand.u32 %s112, 1
          %s884 = scalar_lea.sflag [#allocation4], %s883
          %s885 = sand.u32 %s112, 1
          %s886 = smul.addr %s885, 8
          %s887 = scalar_lea.vmem [#allocation8], %s886
          %889 = dma.done %s884, 128
        $region60: #{tpu_custom_call.1} parent=55 // pred_fallthru
          _
        // Predicated region
        $region61: #{tpu_custom_call.1} parent=55 // pred_check
          %p890 = pneg %p153
        $region62: #{tpu_custom_call.1} parent=55 // pred_check_branch
          %892 = sbr.rel (%p890) target = $region64
        $region63: #{tpu_custom_call.1} parent=55 // pred_region
          %s893 = smul.u32 8, %s26
          %p894 = scmp.lt.s32.totalorder %s893, 15
          %s895 = scalar_select %p894, %s893, 15
          %s896 = scalar_lea.vmem %s4, %s895
        $region64: #{tpu_custom_call.1} parent=55 // pred_fallthru
          _
      $region56: #{tpu_custom_call.1} parent=5 // pred_fallthru
        _
    $region6: #{tpu_custom_call.1} parent=1 // loop_footer
      %s24 = sadd.s32 1, %s20
    $region7: #{tpu_custom_call.1} parent=1 // loop_footer_branch
      %19 = sbr.rel target = $region3
    $region8: #{tpu_custom_call.1} parent=1 // loop_exit
      _
    %897 = vsyncpa [#allocation3], 1
    %s898 = scalar_lea.sflag [#allocation3], 1
    %899 = vsyncpa %s898, 1
    %900 = vsyncpa [#allocation6], 1
    %s901 = scalar_lea.sflag [#allocation6], 1
    %902 = vsyncpa %s901, 1
    %903 = vsyncpa [#allocation4], 1
    %s904 = scalar_lea.sflag [#allocation4], 1
    %905 = vsyncpa %s904, 1

</llo_original>
